<compile_context>
chip_gen: v7x
topology: tpu7x:2x2x1
jax: 0.10.0
libtpu: 0.0.40
codegen_flags: <defaults>
</compile_context>

<pallas_src>
import functools

import jax
import jax.numpy as jnp
from jax.experimental import pallas as pl
from jax.experimental.pallas import tpu as pltpu

_INV_SQRT2 = 0.7071067811865476


def _round_up(x, m):
    return (x + m - 1) // m * m


def _pick_hidden_tile(hidden, max_tile):
    """Pick a hidden-dim tile that exactly divides `hidden` (partial hidden tiles are
    unsafe for the accumulator) and is 128-aligned whenever tiling is actually used."""
    if hidden <= max_tile:
        return hidden
    for t in (max_tile, 512, 256, 128):
        if t <= max_tile and hidden % t == 0:
            return t
    return hidden  # fallback: keep hidden resident (no clean 128-aligned divisor)


def _gelu_exact(h):
    # Exact (erf-based) GELU in f32, matching torch.nn.GELU() default.
    return 0.5 * h * (1.0 + jax.lax.erf(h * jnp.float32(_INV_SQRT2)))


def _ffn_kernel_fused(x_ref, w1_ref, b1_ref, w2_ref, b2_ref, o_ref):
    """Single-pass kernel: whole hidden dim resident. 1-D grid over row tiles."""
    x = x_ref[...].astype(w1_ref.dtype)
    h = jnp.dot(x, w1_ref[...], preferred_element_type=jnp.float32)
    h = _gelu_exact(h + b1_ref[...])
    # Dropout(p=0.0) -> identity.
    out = jnp.dot(h.astype(w2_ref.dtype), w2_ref[...], preferred_element_type=jnp.float32)
    o_ref[...] = (out + b2_ref[...]).astype(o_ref.dtype)


def _ffn_kernel_streamed(x_ref, w1_ref, b1_ref, w2_ref, b2_ref, o_ref, acc_ref):
    """Hidden dim streamed in chunks (2nd grid axis); f32 VMEM accumulator."""
    j = pl.program_id(1)

    @pl.when(j == 0)
    def _init():
        acc_ref[...] = jnp.zeros_like(acc_ref)

    x = x_ref[...].astype(w1_ref.dtype)

    h = jnp.dot(x, w1_ref[...], preferred_element_type=jnp.float32)
    h = _gelu_exact(h + b1_ref[...])
    # Dropout(p=0.0) -> identity.

    acc_ref[...] += jnp.dot(
        h.astype(w2_ref.dtype), w2_ref[...], preferred_element_type=jnp.float32
    )

    @pl.when(j == pl.num_programs(1) - 1)
    def _finalize():
        o_ref[...] = (acc_ref[...] + b2_ref[...]).astype(o_ref.dtype)


@functools.partial(
    jax.jit, static_argnames=("block_rows", "max_hidden_tile", "matmul_dtype")
)
def feed_forward(x, w1, b1, w2, b2, *, block_rows=256, max_hidden_tile=512,
                 matmul_dtype=jnp.bfloat16):
    """x: (B, N, dim) float32. w1: (dim, hidden), w2: (hidden, dim). Returns (B, N, dim)."""
    B, N, dim = x.shape
    hidden = w1.shape[1]
    rows = B * N
    x2d = x.reshape(rows, dim)

    # Row tile: multiple of 16 (bf16 sublane packing), no larger than needed.
    br = max(16, min(_round_up(block_rows, 16), _round_up(rows, 16)))
    # Hidden tile: exact divisor of hidden (128-aligned when actually tiling).
    th = _pick_hidden_tile(hidden, max_hidden_tile)
    n_row_tiles = pl.cdiv(rows, br)
    n_hidden_tiles = hidden // th

    # Cast weights once at the boundary: halves weight HBM traffic / VMEM footprint
    # (weight chunks are re-read for every row tile).
    w1c = w1.astype(matmul_dtype)
    w2c = w2.astype(matmul_dtype)
    b1_2d = b1.reshape(1, hidden).astype(jnp.float32)
    b2_2d = b2.reshape(1, dim).astype(jnp.float32)

    compiler_params = pltpu.CompilerParams(
        dimension_semantics=("parallel",) if n_hidden_tiles == 1
        else ("parallel", "arbitrary"),
        vmem_limit_bytes=64 * 1024 * 1024,
    )

    if n_hidden_tiles == 1:
        # Fully fused: hidden resident, no accumulator scratch, single output store.
        out2d = pl.pallas_call(
            _ffn_kernel_fused,
            out_shape=jax.ShapeDtypeStruct((rows, dim), x.dtype),
            grid_spec=pltpu.PrefetchScalarGridSpec(
                num_scalar_prefetch=0,
                grid=(n_row_tiles,),
                in_specs=[
                    pl.BlockSpec((br, dim), lambda i: (i, 0)),      # x row tile
                    pl.BlockSpec((dim, hidden), lambda i: (0, 0)),  # W1 (resident)
                    pl.BlockSpec((1, hidden), lambda i: (0, 0)),    # b1
                    pl.BlockSpec((hidden, dim), lambda i: (0, 0)),  # W2 (resident)
                    pl.BlockSpec((1, dim), lambda i: (0, 0)),       # b2
                ],
                out_specs=pl.BlockSpec((br, dim), lambda i: (i, 0)),
            ),
            compiler_params=compiler_params,
        )(x2d, w1c, b1_2d, w2c, b2_2d)
    else:
        out2d = pl.pallas_call(
            _ffn_kernel_streamed,
            out_shape=jax.ShapeDtypeStruct((rows, dim), x.dtype),
            grid_spec=pltpu.PrefetchScalarGridSpec(
                num_scalar_prefetch=0,
                grid=(n_row_tiles, n_hidden_tiles),
                in_specs=[
                    pl.BlockSpec((br, dim), lambda i, j: (i, 0)),   # x tile (resident over j)
                    pl.BlockSpec((dim, th), lambda i, j: (0, j)),   # W1 hidden chunk
                    pl.BlockSpec((1, th),   lambda i, j: (0, j)),   # b1 hidden chunk
                    pl.BlockSpec((th, dim), lambda i, j: (j, 0)),   # W2 hidden chunk
                    pl.BlockSpec((1, dim),  lambda i, j: (0, 0)),   # b2
                ],
                out_specs=pl.BlockSpec((br, dim), lambda i, j: (i, 0)),
                scratch_shapes=[pltpu.VMEM((br, dim), jnp.float32)],
            ),
            compiler_params=compiler_params,
        )(x2d, w1c, b1_2d, w2c, b2_2d)

    return out2d.reshape(B, N, dim)


def init_params(key, dim, hidden_dim):
    """Deterministic init mimicking nn.Linear's uniform(-1/sqrt(fan_in), 1/sqrt(fan_in))."""
    k1, k2, k3, k4 = jax.random.split(key, 4)
    bound1 = 1.0 / jnp.sqrt(dim)
    bound2 = 1.0 / jnp.sqrt(hidden_dim)
    # Stored as (in, out) so the kernel does x @ W (== x @ W_torch.T).
    w1 = jax.random.uniform(k1, (dim, hidden_dim), jnp.float32, -bound1, bound1)
    b1 = jax.random.uniform(k2, (hidden_dim,), jnp.float32, -bound1, bound1)
    w2 = jax.random.uniform(k3, (hidden_dim, dim), jnp.float32, -bound2, bound2)
    b2 = jax.random.uniform(k4, (dim,), jnp.float32, -bound2, bound2)
    return w1, b1, w2, b2


def _reference(x, w1, b1, w2, b2):
    h = x @ w1 + b1
    h = 0.5 * h * (1.0 + jax.lax.erf(h / jnp.sqrt(2.0)))
    return h @ w2 + b2


if __name__ == "__main__":
    key = jax.random.PRNGKey(0)
    # Small but lane-dense shapes (dim multiple of 128 keeps output stores unmasked).
    B, N, dim, hidden_dim = 2, 8, 128, 256

    kx, kp = jax.random.split(key)
    x = jax.random.normal(kx, (B, N, dim), jnp.float32)
    w1, b1, w2, b2 = init_params(kp, dim, hidden_dim)

    # Exercise the fused path (hidden resident).
    out = feed_forward(x, w1, b1, w2, b2)
    out = jax.block_until_ready(out)
    ref = _reference(x, w1, b1, w2, b2)
    assert out.shape == (B, N, dim)
    # bf16 matmul operands (f32 accumulation) => loosened tolerance vs f32 reference.
    assert jnp.allclose(out, ref, atol=5e-2, rtol=5e-2), "fused path mismatch vs reference"

    # Also exercise the streamed (hidden-chunked) path.
    out_s = feed_forward(x, w1, b1, w2, b2, max_hidden_tile=128)
    out_s = jax.block_until_ready(out_s)
    assert jnp.allclose(out_s, ref, atol=5e-2, rtol=5e-2), "streamed path mismatch vs reference"

    print("KERNEL_OK")
</pallas_src>

<mosaic_0001>
module attributes {stable_mosaic.version = 11 : i64} {
  func.func @_ffn_kernel_fused(%arg0: i32, %arg1: memref<16x128xf32, #tpu.memory_space<vmem>>, %arg2: memref<128x256xbf16, #tpu.memory_space<vmem>>, %arg3: memref<1x256xf32, #tpu.memory_space<vmem>>, %arg4: memref<256x128xbf16, #tpu.memory_space<vmem>>, %arg5: memref<1x128xf32, #tpu.memory_space<vmem>>, %arg6: memref<16x128xf32, #tpu.memory_space<vmem>>) attributes {dimension_semantics = [#tpu.dimension_semantics<parallel>], iteration_bounds = array<i64: 1>, scalar_prefetch = 0 : i64, scratch_operands = 0 : i64, tpu.core_type = #tpu.core_type<tc>, window_params = [{transform_indices = @transform_0, window_bounds = array<i64: 16, 128>}, {pipeline_mode = #tpu.pipeline_mode<synchronous>, transform_indices = @transform_1, window_bounds = array<i64: 128, 256>}, {pipeline_mode = #tpu.pipeline_mode<synchronous>, transform_indices = @transform_2, window_bounds = array<i64: 1, 256>}, {pipeline_mode = #tpu.pipeline_mode<synchronous>, transform_indices = @transform_3, window_bounds = array<i64: 256, 128>}, {pipeline_mode = #tpu.pipeline_mode<synchronous>, transform_indices = @transform_4, window_bounds = array<i64: 1, 128>}, {transform_indices = @transform_5, window_bounds = array<i64: 16, 128>}]} {
    %c0 = arith.constant 0 : index
    %c0_0 = arith.constant 0 : index
    %0 = vector.load %arg1[%c0, %c0_0] : memref<16x128xf32, #tpu.memory_space<vmem>>, vector<16x128xf32>
    %1 = arith.truncf %0 : vector<16x128xf32> to vector<16x128xbf16>
    %c0_1 = arith.constant 0 : index
    %c0_2 = arith.constant 0 : index
    %2 = vector.load %arg2[%c0_1, %c0_2] : memref<128x256xbf16, #tpu.memory_space<vmem>>, vector<128x256xbf16>
    %cst = arith.constant dense<0.000000e+00> : vector<16x256xf32>
    %3 = tpu.matmul %1, %2, %cst {dimension_numbers = #tpu.dot_dimension_numbers<[1], [0], [0], [1], [0, 0, 1, 1], [], []>} : vector<16x128xbf16>, vector<128x256xbf16>, vector<16x256xf32> -> vector<16x256xf32>
    %c0_3 = arith.constant 0 : index
    %c0_4 = arith.constant 0 : index
    %4 = vector.load %arg3[%c0_3, %c0_4] : memref<1x256xf32, #tpu.memory_space<vmem>>, vector<1x256xf32>
    %5 = vector.broadcast %4 : vector<1x256xf32> to vector<16x256xf32>
    %6 = arith.addf %3, %5 : vector<16x256xf32>
    %cst_5 = arith.constant 5.000000e-01 : f32
    %7 = vector.broadcast %cst_5 : f32 to vector<16x256xf32>
    %8 = arith.mulf %7, %6 : vector<16x256xf32>
    %cst_6 = arith.constant 0.707106769 : f32
    %9 = vector.broadcast %cst_6 : f32 to vector<16x256xf32>
    %10 = arith.mulf %6, %9 : vector<16x256xf32>
    %11 = math.erf %10 : vector<16x256xf32>
    %cst_7 = arith.constant 1.000000e+00 : f32
    %12 = vector.broadcast %cst_7 : f32 to vector<16x256xf32>
    %13 = arith.addf %12, %11 : vector<16x256xf32>
    %14 = arith.mulf %8, %13 : vector<16x256xf32>
    %15 = arith.truncf %14 : vector<16x256xf32> to vector<16x256xbf16>
    %c0_8 = arith.constant 0 : index
    %c0_9 = arith.constant 0 : index
    %16 = vector.load %arg4[%c0_8, %c0_9] : memref<256x128xbf16, #tpu.memory_space<vmem>>, vector<256x128xbf16>
    %cst_10 = arith.constant dense<0.000000e+00> : vector<16x128xf32>
    %17 = tpu.matmul %15, %16, %cst_10 {dimension_numbers = #tpu.dot_dimension_numbers<[1], [0], [0], [1], [0, 0, 1, 1], [], []>} : vector<16x256xbf16>, vector<256x128xbf16>, vector<16x128xf32> -> vector<16x128xf32>
    %c0_11 = arith.constant 0 : index
    %c0_12 = arith.constant 0 : index
    %18 = vector.load %arg5[%c0_11, %c0_12] : memref<1x128xf32, #tpu.memory_space<vmem>>, vector<1x128xf32>
    %19 = vector.broadcast %18 : vector<1x128xf32> to vector<16x128xf32>
    %20 = arith.addf %17, %19 : vector<16x128xf32>
    %c0_13 = arith.constant 0 : index
    %c0_14 = arith.constant 0 : index
    %21 = vector.load %arg6[%c0_13, %c0_14] : memref<16x128xf32, #tpu.memory_space<vmem>>, vector<16x128xf32>
    tpu.vector_store %arg6[%c0_13, %c0_14], %20 {strides = array<i32>} : memref<16x128xf32, #tpu.memory_space<vmem>>, vector<16x128xf32>,
    return
  }
  func.func @transform_0(%arg0: i32) -> (i32, i32) {
    %c0_i32 = arith.constant 0 : i32
    %c0_i32_0 = arith.constant 0 : i32
    return %arg0, %c0_i32 : i32, i32
  }
  func.func @transform_1(%arg0: i32) -> (i32, i32) {
    %c0_i32 = arith.constant 0 : i32
    %c0_i32_0 = arith.constant 0 : i32
    %c0_i32_1 = arith.constant 0 : i32
    return %c0_i32, %c0_i32_0 : i32, i32
  }
  func.func @transform_2(%arg0: i32) -> (i32, i32) {
    %c0_i32 = arith.constant 0 : i32
    %c0_i32_0 = arith.constant 0 : i32
    %c0_i32_1 = arith.constant 0 : i32
    return %c0_i32, %c0_i32_0 : i32, i32
  }
  func.func @transform_3(%arg0: i32) -> (i32, i32) {
    %c0_i32 = arith.constant 0 : i32
    %c0_i32_0 = arith.constant 0 : i32
    %c0_i32_1 = arith.constant 0 : i32
    return %c0_i32, %c0_i32_0 : i32, i32
  }
  func.func @transform_4(%arg0: i32) -> (i32, i32) {
    %c0_i32 = arith.constant 0 : i32
    %c0_i32_0 = arith.constant 0 : i32
    %c0_i32_1 = arith.constant 0 : i32
    return %c0_i32, %c0_i32_0 : i32, i32
  }
  func.func @transform_5(%arg0: i32) -> (i32, i32) {
    %c0_i32 = arith.constant 0 : i32
    %c0_i32_0 = arith.constant 0 : i32
    return %arg0, %c0_i32 : i32, i32
  }
}

</mosaic_0001>

<llo_original>
// kernel: feed_forward.1
$region0: #{feed_forward.1}
  #allocation0 [shape = 'u32[]', space=smem, size = 0x4, offset = 0x4, fixed_abs, tag = 'smem constant byte address 0x4 - core index']
  #allocation1 [shape = 'u32[144,128]{1,0:T(1,128)}', space=vmem, size = 0x12000, scoped, tag = 'internal scratch']
  %s0 = inlined_call_operand.hbm [shape: f32[16,128], index: 0, kind: input, shape index: {}]
  %s1 = inlined_call_operand.hbm [shape: bf16[128,256], index: 1, kind: input, shape index: {}]
  %s2 = inlined_call_operand.hbm [shape: f32[1,256], index: 2, kind: input, shape index: {}]
  %s3 = inlined_call_operand.hbm [shape: bf16[256,128], index: 3, kind: input, shape index: {}]
  %s4 = inlined_call_operand.hbm [shape: f32[1,128], index: 4, kind: input, shape index: {}]
  %s5 = inlined_call_operand.hbm [shape: f32[16,128], index: 5, kind: output, shape index: {}]
  %s6 = sld [smem:[#allocation0]]
  $region50: #{feed_forward.1} parent=0
    _
  %s8 = ssub.s32 1, %s6
  %s9 = scalar_select 0, %s8, %s6
  $region1: #{feed_forward.1} parent=0
    #allocation2 [shape = 'u8[8192]{0}', space=vmem, size = 0x2000, scoped, tag = 'input window, operand 0, single buffered']
    #allocation3 [shape = 's32[1]{0}', space=sflag, size = 0x4, scoped, tag = 'scoped memory for feed_forward.1']
    #allocation4 [shape = 's32[1]{0}', space=sflag, size = 0x4, scoped, tag = 'scoped memory for feed_forward.1']
    #allocation5 [shape = 'u8[65536]{0}', space=vmem, size = 0x10000, scoped, tag = 'input window, operand 1, single buffered']
    #allocation6 [shape = 's32[1]{0}', space=sflag, size = 0x4, scoped, tag = 'scoped memory for feed_forward.1']
    #allocation7 [shape = 'u8[1024]{0}', space=vmem, size = 0x400, scoped, tag = 'input window, operand 2, single buffered']
    #allocation8 [shape = 'u8[65536]{0}', space=vmem, size = 0x10000, scoped, tag = 'input window, operand 3, single buffered']
    #allocation9 [shape = 's32[1]{0}', space=sflag, size = 0x4, scoped, tag = 'scoped memory for feed_forward.1']
    #allocation10 [shape = 'u8[512]{0}', space=vmem, size = 0x400, scoped, tag = 'input window, operand 4, single buffered']
    #allocation11 [shape = 'u8[8192]{0}', space=vmem, size = 0x2000, scoped, tag = 'output window, operand 0, single buffered']
    %10 = vsyncpa [#allocation3], 0
    %11 = vsyncpa [#allocation6], 0
    %12 = vsyncpa [#allocation9], 0
    %13 = vsyncpa [#allocation4], 0
    // Predicated region
    $region2: #{feed_forward.1} parent=1 // pred_check
      _
    $region3: #{feed_forward.1} parent=1 // pred_check_branch
      %15 = sbr.rel (0) target = $region5
    $region4: #{feed_forward.1} parent=1 // pred_region
      %s17 = ssub.s32 256, 256
      %18 = vsyncadd [#allocation3], %s17
      %s19 = sshll.u32 [#allocation2], 4
      %s20 = int_to_ptr.vmem [resolvable:$true] %s19
      %25 = dma.hbm_to_vmem [thread:$0]  %s0, 256, %s20, [#allocation3], 128, 128, 8
    $region5: #{feed_forward.1} parent=1 // pred_fallthru
      _
    // Predicated region
    $region6: #{feed_forward.1} parent=1 // pred_check
      _
    $region7: #{feed_forward.1} parent=1 // pred_check_branch
      %27 = sbr.rel (0) target = $region9
    $region8: #{feed_forward.1} parent=1 // pred_region
      %s29 = ssub.s32 2048, 2048
      %30 = vsyncadd [#allocation6], %s29
      %s31 = sshll.u32 [#allocation5], 4
      %s32 = int_to_ptr.vmem [resolvable:$true] %s31
      %37 = dma.hbm_to_vmem [thread:$0]  %s1, 2048, %s32, [#allocation6], 128, 128, 8
    $region9: #{feed_forward.1} parent=1 // pred_fallthru
      _
    // Predicated region
    $region10: #{feed_forward.1} parent=1 // pred_check
      _
    $region11: #{feed_forward.1} parent=1 // pred_check_branch
      %39 = sbr.rel (0) target = $region13
    $region12: #{feed_forward.1} parent=1 // pred_region
      %s41 = ssub.s32 32, 32
      %42 = vsyncadd [#allocation6], %s41
      %s44 = sshll.u32 [#allocation7], 4
      %s45 = int_to_ptr.vmem [resolvable:$true] %s44
      %47 = dma.hbm_to_vmem [thread:$0]  %s2, 32, %s45, [#allocation6]
    $region13: #{feed_forward.1} parent=1 // pred_fallthru
      _
    // Predicated region
    $region14: #{feed_forward.1} parent=1 // pred_check
      _
    $region15: #{feed_forward.1} parent=1 // pred_check_branch
      %49 = sbr.rel (0) target = $region17
    $region16: #{feed_forward.1} parent=1 // pred_region
      %s51 = ssub.s32 2048, 2048
      %52 = vsyncadd [#allocation9], %s51
      %s53 = sshll.u32 [#allocation8], 4
      %s54 = int_to_ptr.vmem [resolvable:$true] %s53
      %59 = dma.hbm_to_vmem [thread:$0]  %s3, 2048, %s54, [#allocation9], 64, 64, 4
    $region17: #{feed_forward.1} parent=1 // pred_fallthru
      _
    // Predicated region
    $region18: #{feed_forward.1} parent=1 // pred_check
      _
    $region19: #{feed_forward.1} parent=1 // pred_check_branch
      %61 = sbr.rel (0) target = $region21
    $region20: #{feed_forward.1} parent=1 // pred_region
      %s63 = ssub.s32 16, 16
      %64 = vsyncadd [#allocation9], %s63
      %s66 = sshll.u32 [#allocation10], 4
      %s67 = int_to_ptr.vmem [resolvable:$true] %s66
      %69 = dma.hbm_to_vmem [thread:$0]  %s4, 16, %s67, [#allocation9]
    $region21: #{feed_forward.1} parent=1 // pred_fallthru
      _
    // Predicated region
    $region22: #{feed_forward.1} parent=1 // pred_check
      _
    $region23: #{feed_forward.1} parent=1 // pred_check_branch
      %71 = sbr.rel (0) target = $region25
    $region24: #{feed_forward.1} parent=1 // pred_region
      %72 = dma.done [#allocation3], 256
    $region25: #{feed_forward.1} parent=1 // pred_fallthru
      _
    // Predicated region
    $region26: #{feed_forward.1} parent=1 // pred_check
      _
    $region27: #{feed_forward.1} parent=1 // pred_check_branch
      %74 = sbr.rel (0) target = $region29
    $region28: #{feed_forward.1} parent=1 // pred_region
      %75 = dma.done [#allocation6], 2048
    $region29: #{feed_forward.1} parent=1 // pred_fallthru
      _
    // Predicated region
    $region30: #{feed_forward.1} parent=1 // pred_check
      _
    $region31: #{feed_forward.1} parent=1 // pred_check_branch
      %77 = sbr.rel (0) target = $region33
    $region32: #{feed_forward.1} parent=1 // pred_region
      %78 = dma.done [#allocation6], 32
    $region33: #{feed_forward.1} parent=1 // pred_fallthru
      _
    // Predicated region
    $region34: #{feed_forward.1} parent=1 // pred_check
      _
    $region35: #{feed_forward.1} parent=1 // pred_check_branch
      %80 = sbr.rel (0) target = $region37
    $region36: #{feed_forward.1} parent=1 // pred_region
      %81 = dma.done [#allocation9], 2048
    $region37: #{feed_forward.1} parent=1 // pred_fallthru
      _
    // Predicated region
    $region38: #{feed_forward.1} parent=1 // pred_check
      _
    $region39: #{feed_forward.1} parent=1 // pred_check_branch
      %83 = sbr.rel (0) target = $region41
    $region40: #{feed_forward.1} parent=1 // pred_region
      %84 = dma.done [#allocation9], 16
    $region41: #{feed_forward.1} parent=1 // pred_fallthru
      _
    %v86 = vld [vmem:[#allocation2] sm:$0xff]
    %v87 = vld [vmem:[#allocation2 + $0x8] sm:$0xff]
    %v88 = vpack.c.bf16 %v87, %v86
    %v89 = vld [vmem:[#allocation5] sm:$0xff]
    %v90 = vld [vmem:[#allocation5 + $0x8] sm:$0xff]
    %v91 = vld [vmem:[#allocation5 + $0x10] sm:$0xff]
    %v92 = vld [vmem:[#allocation5 + $0x18] sm:$0xff]
    %v93 = vld [vmem:[#allocation5 + $0x20] sm:$0xff]
    %v94 = vld [vmem:[#allocation5 + $0x28] sm:$0xff]
    %v95 = vld [vmem:[#allocation5 + $0x30] sm:$0xff]
    %v96 = vld [vmem:[#allocation5 + $0x38] sm:$0xff]
    %v97 = vld [vmem:[#allocation5 + $0x40] sm:$0xff]
    %v98 = vld [vmem:[#allocation5 + $0x48] sm:$0xff]
    %v99 = vld [vmem:[#allocation5 + $0x50] sm:$0xff]
    %v100 = vld [vmem:[#allocation5 + $0x58] sm:$0xff]
    %v101 = vld [vmem:[#allocation5 + $0x60] sm:$0xff]
    %v102 = vld [vmem:[#allocation5 + $0x68] sm:$0xff]
    %v103 = vld [vmem:[#allocation5 + $0x70] sm:$0xff]
    %v104 = vld [vmem:[#allocation5 + $0x78] sm:$0xff]
    %v105 = vld [vmem:[#allocation7] sm:$0x3]
    %v107 = vlaneseq
    %v108 = vshrl.u32 %v107, 7
    %v109 = vsub.s32 0, %v108
    %v110 = vrot.slane %v105, %v109
    %v111 = vlaneseq
    %v112 = vshrl.u32 %v111, 7
    %v113 = vsub.s32 1, %v112
    %v114 = vrot.slane %v105, %v113
    %v133 = vunpack.c.l.b16 %v89
    %v134 = vunpack.c.h.b16 %v89
    %v135 = vunpack.c.l.b16 %v90
    %v136 = vunpack.c.h.b16 %v90
    %v137 = vunpack.c.l.b16 %v91
    %v138 = vunpack.c.h.b16 %v91
    %v139 = vunpack.c.l.b16 %v92
    %v140 = vunpack.c.h.b16 %v92
    %v141 = vunpack.c.l.b16 %v93
    %v142 = vunpack.c.h.b16 %v93
    %v143 = vunpack.c.l.b16 %v94
    %v144 = vunpack.c.h.b16 %v94
    %v145 = vunpack.c.l.b16 %v95
    %v146 = vunpack.c.h.b16 %v95
    %v147 = vunpack.c.l.b16 %v96
    %v148 = vunpack.c.h.b16 %v96
    %v149 = vunpack.c.l.b16 %v97
    %v150 = vunpack.c.h.b16 %v97
    %v151 = vunpack.c.l.b16 %v98
    %v152 = vunpack.c.h.b16 %v98
    %v153 = vunpack.c.l.b16 %v99
    %v154 = vunpack.c.h.b16 %v99
    %v155 = vunpack.c.l.b16 %v100
    %v156 = vunpack.c.h.b16 %v100
    %v157 = vunpack.c.l.b16 %v101
    %v158 = vunpack.c.h.b16 %v101
    %v159 = vunpack.c.l.b16 %v102
    %v160 = vunpack.c.h.b16 %v102
    %v161 = vunpack.c.l.b16 %v103
    %v162 = vunpack.c.h.b16 %v103
    %v163 = vunpack.c.l.b16 %v104
    %v164 = vunpack.c.h.b16 %v104
    %v165 = vpack.c.b16 %v135, %v133
    %v166 = vpack.c.b16 %v136, %v134
    %v167 = vpack.c.b16 %v139, %v137
    %v168 = vpack.c.b16 %v140, %v138
    %v169 = vpack.c.b16 %v143, %v141
    %v170 = vpack.c.b16 %v144, %v142
    %v171 = vpack.c.b16 %v147, %v145
    %v172 = vpack.c.b16 %v148, %v146
    %v173 = vpack.c.b16 %v151, %v149
    %v174 = vpack.c.b16 %v152, %v150
    %v175 = vpack.c.b16 %v155, %v153
    %v176 = vpack.c.b16 %v156, %v154
    %v177 = vpack.c.b16 %v159, %v157
    %v178 = vpack.c.b16 %v160, %v158
    %v179 = vpack.c.b16 %v163, %v161
    %v180 = vpack.c.b16 %v164, %v162
    %197 = vmatprep.subr.bf16.mxu0 %v166
    %198 = vmatpush1.bf16.msra.mxu0 %v165
    %199 = vmatprep.subr.bf16.mxu0 %v168
    %200 = vmatpush1.bf16.msra.mxu0 %v167
    %201 = vmatprep.subr.bf16.mxu0 %v170
    %202 = vmatpush1.bf16.msra.mxu0 %v169
    %203 = vmatprep.subr.bf16.mxu0 %v172
    %204 = vmatpush1.bf16.msra.mxu0 %v171
    %205 = vmatprep.subr.bf16.mxu0 %v174
    %206 = vmatpush1.bf16.msra.mxu0 %v173
    %207 = vmatprep.subr.bf16.mxu0 %v176
    %208 = vmatpush1.bf16.msra.mxu0 %v175
    %209 = vmatprep.subr.bf16.mxu0 %v178
    %210 = vmatpush1.bf16.msra.mxu0 %v177
    %211 = vmatprep.subr.bf16.mxu0 %v180
    %212 = vmatpush1.bf16.msra.mxu0 %v179
    %213 = vmatprep.subr.bf16.mxu0 0
    %214 = vmatpush1.bf16.msra.mxu0 0
    %215 = vmatprep.subr.bf16.mxu0 0
    %216 = vmatpush1.bf16.msra.mxu0 0
    %217 = vmatprep.subr.bf16.mxu0 0
    %218 = vmatpush1.bf16.msra.mxu0 0
    %219 = vmatprep.subr.bf16.mxu0 0
    %220 = vmatpush1.bf16.msra.mxu0 0
    %221 = vmatprep.subr.bf16.mxu0 0
    %222 = vmatpush1.bf16.msra.mxu0 0
    %223 = vmatprep.subr.bf16.mxu0 0
    %224 = vmatpush1.bf16.msra.mxu0 0
    %225 = vmatprep.subr.bf16.mxu0 0
    %226 = vmatpush1.bf16.msra.mxu0 0
    %227 = vmatprep.subr.bf16.mxu0 0
    %228 = vmatpush1.bf16.msra.mxu0 0
    %229 = vmatprep.mubr.bf16.mxu0 0
    %230 = vmatmul.mubr.bf16.gmra.mrb[0].mxu0 %v88
    %v231 = vpop.f32.mrb[0].mxu0
    %v232 = vadd.f32 %v110, %v231
    %v233 = vpop.f32.mrb[0].mxu0
    %v234 = vadd.f32 %v114, %v233
    %v235 = vpop.f32.mrb[0].mxu0
    %v236 = vadd.f32 %v110, %v235
    %v237 = vpop.f32.mrb[0].mxu0
    %v238 = vadd.f32 %v114, %v237
    %239 = vdwg.mxu0
    %v240 = vmul.f32 %v232, 0.5
    %v241 = vmul.f32 %v234, 0.5
    %v242 = vmul.f32 %v236, 0.5
    %v243 = vmul.f32 %v238, 0.5
    %v244 = vmul.f32 %v232, 0.70710677
    %v245 = vmul.f32 %v234, 0.70710677
    %v246 = vmul.f32 %v236, 0.70710677
    %v247 = vmul.f32 %v238, 0.70710677
    %v248 = verf.f32.pop %v244
    %v249 = verf.f32.pop %v245
    %v250 = verf.f32.pop %v246
    %v251 = verf.f32.pop %v247
    %v252 = vadd.f32 %v248, 1.0
    %v253 = vadd.f32 %v249, 1.0
    %v254 = vadd.f32 %v250, 1.0
    %v255 = vadd.f32 %v251, 1.0
    %v256 = vmul.f32 %v240, %v252
    %v257 = vmul.f32 %v241, %v253
    %v258 = vmul.f32 %v242, %v254
    %v259 = vmul.f32 %v243, %v255
    %v260 = vpack.c.bf16 %v258, %v256
    %v261 = vpack.c.bf16 %v259, %v257
    %v262 = vld [vmem:[#allocation8] sm:$0xf]
    %v263 = vld [vmem:[#allocation8 + $0x4] sm:$0xf]
    %v264 = vld [vmem:[#allocation8 + $0x8] sm:$0xf]
    %v265 = vld [vmem:[#allocation8 + $0xc] sm:$0xf]
    %v266 = vld [vmem:[#allocation8 + $0x10] sm:$0xf]
    %v267 = vld [vmem:[#allocation8 + $0x14] sm:$0xf]
    %v268 = vld [vmem:[#allocation8 + $0x18] sm:$0xf]
    %v269 = vld [vmem:[#allocation8 + $0x1c] sm:$0xf]
    %v270 = vld [vmem:[#allocation8 + $0x20] sm:$0xf]
    %v271 = vld [vmem:[#allocation8 + $0x24] sm:$0xf]
    %v272 = vld [vmem:[#allocation8 + $0x28] sm:$0xf]
    %v273 = vld [vmem:[#allocation8 + $0x2c] sm:$0xf]
    %v274 = vld [vmem:[#allocation8 + $0x30] sm:$0xf]
    %v275 = vld [vmem:[#allocation8 + $0x34] sm:$0xf]
    %v276 = vld [vmem:[#allocation8 + $0x38] sm:$0xf]
    %v277 = vld [vmem:[#allocation8 + $0x3c] sm:$0xf]
    %v278 = vld [vmem:[#allocation8 + $0x40] sm:$0xf]
    %v279 = vld [vmem:[#allocation8 + $0x44] sm:$0xf]
    %v280 = vld [vmem:[#allocation8 + $0x48] sm:$0xf]
    %v281 = vld [vmem:[#allocation8 + $0x4c] sm:$0xf]
    %v282 = vld [vmem:[#allocation8 + $0x50] sm:$0xf]
    %v283 = vld [vmem:[#allocation8 + $0x54] sm:$0xf]
    %v284 = vld [vmem:[#allocation8 + $0x58] sm:$0xf]
    %v285 = vld [vmem:[#allocation8 + $0x5c] sm:$0xf]
    %v286 = vld [vmem:[#allocation8 + $0x60] sm:$0xf]
    %v287 = vld [vmem:[#allocation8 + $0x64] sm:$0xf]
    %v288 = vld [vmem:[#allocation8 + $0x68] sm:$0xf]
    %v289 = vld [vmem:[#allocation8 + $0x6c] sm:$0xf]
    %v290 = vld [vmem:[#allocation8 + $0x70] sm:$0xf]
    %v291 = vld [vmem:[#allocation8 + $0x74] sm:$0xf]
    %v292 = vld [vmem:[#allocation8 + $0x78] sm:$0xf]
    %v293 = vld [vmem:[#allocation8 + $0x7c] sm:$0xf]
    %v294 = vld [vmem:[#allocation10] sm:$0x1]
    %v296 = vlaneseq
    %v297 = vshrl.u32 %v296, 7
    %v298 = vsub.s32 0, %v297
    %v299 = vrot.slane %v294, %v298
    %v333 = vunpack.c.l.b16 %v262
    %v334 = vunpack.c.l.b16 %v263
    %v335 = vunpack.c.l.b16 %v264
    %v336 = vunpack.c.l.b16 %v265
    %v337 = vunpack.c.l.b16 %v266
    %v338 = vunpack.c.l.b16 %v267
    %v339 = vunpack.c.l.b16 %v268
    %v340 = vunpack.c.l.b16 %v269
    %v341 = vunpack.c.l.b16 %v270
    %v342 = vunpack.c.l.b16 %v271
    %v343 = vunpack.c.l.b16 %v272
    %v344 = vunpack.c.l.b16 %v273
    %v345 = vunpack.c.l.b16 %v274
    %v346 = vunpack.c.l.b16 %v275
    %v347 = vunpack.c.l.b16 %v276
    %v348 = vunpack.c.l.b16 %v277
    %v349 = vunpack.c.l.b16 %v278
    %v350 = vunpack.c.l.b16 %v279
    %v351 = vunpack.c.l.b16 %v280
    %v352 = vunpack.c.l.b16 %v281
    %v353 = vunpack.c.l.b16 %v282
    %v354 = vunpack.c.l.b16 %v283
    %v355 = vunpack.c.l.b16 %v284
    %v356 = vunpack.c.l.b16 %v285
    %v357 = vunpack.c.l.b16 %v286
    %v358 = vunpack.c.l.b16 %v287
    %v359 = vunpack.c.l.b16 %v288
    %v360 = vunpack.c.l.b16 %v289
    %v361 = vunpack.c.l.b16 %v290
    %v362 = vunpack.c.l.b16 %v291
    %v363 = vunpack.c.l.b16 %v292
    %v364 = vunpack.c.l.b16 %v293
    %v365 = vpack.c.b16 %v334, %v333
    %v366 = vpack.c.b16 %v336, %v335
    %v367 = vpack.c.b16 %v338, %v337
    %v368 = vpack.c.b16 %v340, %v339
    %v369 = vpack.c.b16 %v342, %v341
    %v370 = vpack.c.b16 %v344, %v343
    %v371 = vpack.c.b16 %v346, %v345
    %v372 = vpack.c.b16 %v348, %v347
    %v373 = vpack.c.b16 %v350, %v349
    %v374 = vpack.c.b16 %v352, %v351
    %v375 = vpack.c.b16 %v354, %v353
    %v376 = vpack.c.b16 %v356, %v355
    %v377 = vpack.c.b16 %v358, %v357
    %v378 = vpack.c.b16 %v360, %v359
    %v379 = vpack.c.b16 %v362, %v361
    %v380 = vpack.c.b16 %v364, %v363
    %397 = vmatprep.subr.bf16.mxu0 0
    %398 = vmatpush1.bf16.msra.mxu0 %v365
    %399 = vmatprep.subr.bf16.mxu0 0
    %400 = vmatpush1.bf16.msra.mxu0 %v366
    %401 = vmatprep.subr.bf16.mxu0 0
    %402 = vmatpush1.bf16.msra.mxu0 %v367
    %403 = vmatprep.subr.bf16.mxu0 0
    %404 = vmatpush1.bf16.msra.mxu0 %v368
    %405 = vmatprep.subr.bf16.mxu0 0
    %406 = vmatpush1.bf16.msra.mxu0 %v369
    %407 = vmatprep.subr.bf16.mxu0 0
    %408 = vmatpush1.bf16.msra.mxu0 %v370
    %409 = vmatprep.subr.bf16.mxu0 0
    %410 = vmatpush1.bf16.msra.mxu0 %v371
    %411 = vmatprep.subr.bf16.mxu0 0
    %412 = vmatpush1.bf16.msra.mxu0 %v372
    %413 = vmatprep.subr.bf16.mxu0 0
    %414 = vmatpush1.bf16.msra.mxu0 %v373
    %415 = vmatprep.subr.bf16.mxu0 0
    %416 = vmatpush1.bf16.msra.mxu0 %v374
    %417 = vmatprep.subr.bf16.mxu0 0
    %418 = vmatpush1.bf16.msra.mxu0 %v375
    %419 = vmatprep.subr.bf16.mxu0 0
    %420 = vmatpush1.bf16.msra.mxu0 %v376
    %421 = vmatprep.subr.bf16.mxu0 0
    %422 = vmatpush1.bf16.msra.mxu0 %v377
    %423 = vmatprep.subr.bf16.mxu0 0
    %424 = vmatpush1.bf16.msra.mxu0 %v378
    %425 = vmatprep.subr.bf16.mxu0 0
    %426 = vmatpush1.bf16.msra.mxu0 %v379
    %427 = vmatprep.subr.bf16.mxu0 0
    %428 = vmatpush1.bf16.msra.mxu0 %v380
    %429 = vmatprep.mubr.bf16.mxu0 %v261
    %430 = vmatmul.mubr.bf16.gmra.mrb[0].mxu0 %v260
    %v431 = vpop.f32.mrb[0].mxu0
    %v432 = vadd.f32 %v299, %v431
    %v433 = vpop.f32.mrb[0].mxu0
    %v434 = vpop.f32.mrb[0].mxu0
    %v435 = vadd.f32 %v299, %v434
    %v436 = vpop.f32.mrb[0].mxu0
    %437 = vdwg.mxu0
    %438 = vst [vmem:[#allocation11] sm:$0xff] %v432
    %439 = vst [vmem:[#allocation11 + $0x8] sm:$0xff] %v435
    // Predicated region
    $region42: #{feed_forward.1} parent=1 // pred_check
      _
    $region43: #{feed_forward.1} parent=1 // pred_check_branch
      %441 = sbr.rel (0) target = $region45
    $region44: #{feed_forward.1} parent=1 // pred_region
      %s443 = ssub.s32 256, 256
      %444 = vsyncadd [#allocation4], %s443
      %s445 = sshll.u32 [#allocation11], 4
      %s446 = int_to_ptr.vmem [resolvable:$true] %s445
      %451 = dma.vmem_to_hbm [thread:$0]  %s446, 256, %s5, [#allocation4], 128, 128, 8
    $region45: #{feed_forward.1} parent=1 // pred_fallthru
      _
    // Predicated region
    $region46: #{feed_forward.1} parent=1 // pred_check
      _
    $region47: #{feed_forward.1} parent=1 // pred_check_branch
      %453 = sbr.rel (0) target = $region49
    $region48: #{feed_forward.1} parent=1 // pred_region
      %454 = dma.done [#allocation4], 256
    $region49: #{feed_forward.1} parent=1 // pred_fallthru
      _
    %455 = vsyncpa [#allocation3], 1
    %456 = vsyncpa [#allocation6], 1
    %457 = vsyncpa [#allocation9], 1
    %458 = vsyncpa [#allocation4], 1

</llo_original>
